<compile_context>
chip_gen: v7x
topology: tpu7x:2x2x1
jax: 0.10.0
libtpu: 0.0.40
codegen_flags: <defaults>
</compile_context>

<pallas_src>
import math

import jax
import jax.numpy as jnp
from jax.experimental import pallas as pl
from jax.experimental.pallas import tpu as pltpu


def _round_up(x, m):
    return ((x + m - 1) // m) * m


def _lane_tiles(n, max_tile=512):
    """Round n up to a lane-aligned padded extent and pick a lane-tile size."""
    n_pad = _round_up(n, 128)
    if n_pad >= max_tile:
        tile = max_tile
        n_pad = _round_up(n_pad, tile)
    else:
        tile = n_pad
    return n_pad, tile


def _pad_lanes_boxes_t(boxes_t, pp):
    """Pad the lane (last) axis of an SoA (..., 4, P) box array up to pp with
    unit boxes [0, 0, 1, 1] so padded lanes never produce divide-by-zero."""
    *lead, _, p = boxes_t.shape
    if pp == p:
        return boxes_t
    pad_box = jnp.array([0.0, 0.0, 1.0, 1.0], jnp.float32).reshape((1,) * len(lead) + (4, 1))
    pad = jnp.broadcast_to(pad_box, tuple(lead) + (4, pp - p))
    return jnp.concatenate([boxes_t, pad], axis=-1)


# ----------------------------------------------------------------------------
# 1) Fused: box_iou + Matcher(0.5, 0.5, allow_low_quality_matches=False)
#    + gather of matched GT boxes + BoxCoder(10,10,5,5).encode
#    Layout: gt (B, G, 4)  (tiny, read-only, AoS is fine)
#            proposals (B, 4, Pp) SoA, Pp lane-aligned, grid over lane tiles.
#    Outputs: iou (B, G, Pp), matched_idxs+labels packed (B, 2, Pp) int32,
#             regression targets (B, 4, Pp) SoA.
# ----------------------------------------------------------------------------
def _assign_encode_kernel(gt_ref, prop_ref, iou_ref, ml_ref, reg_ref):
    gt = gt_ref[...]      # (B, G, 4)
    pr = prop_ref[...]    # (B, 4, tP)

    gx1 = gt[:, :, 0:1]; gy1 = gt[:, :, 1:2]; gx2 = gt[:, :, 2:3]; gy2 = gt[:, :, 3:4]  # (B, G, 1)
    px1 = pr[:, 0:1, :]; py1 = pr[:, 1:2, :]; px2 = pr[:, 2:3, :]; py2 = pr[:, 3:4, :]  # (B, 1, tP)

    ix1 = jnp.maximum(px1, gx1)
    iy1 = jnp.maximum(py1, gy1)
    ix2 = jnp.minimum(px2, gx2)
    iy2 = jnp.minimum(py2, gy2)
    inter = jnp.maximum(ix2 - ix1, 0.0) * jnp.maximum(iy2 - iy1, 0.0)     # (B, G, tP)
    area_g = (gx2 - gx1) * (gy2 - gy1)                                    # (B, G, 1)
    area_p = (px2 - px1) * (py2 - py1)                                    # (B, 1, tP)
    # NOTE: unguarded division (zero-area boxes -> NaN), matching torchvision box_iou.
    iou = inter / (area_p + area_g - inter)                               # (B, G, tP)
    iou_ref[...] = iou

    g = iou.shape[1]
    matched_vals = jnp.max(iou, axis=1, keepdims=True)                    # (B, 1, tP)
    rowf = jax.lax.broadcasted_iota(jnp.int32, iou.shape, 1).astype(jnp.float32)
    # first argmax over the GT axis (torch.max tie-breaking), kept in f32 on the VPU
    matchesf = jnp.min(jnp.where(iou == matched_vals, rowf, float(g)),
                       axis=1, keepdims=True)                             # (B, 1, tP)
    below = matched_vals < 0.5      # BELOW_LOW_THRESHOLD; low == high so no BETWEEN case
    matched_idxf = jnp.where(below, -1.0, matchesf)
    ml_ref[:, 0:1, :] = matched_idxf.astype(jnp.int32)
    # gt_labels are all-ones in select_training_samples; bg -> 0.
    # TODO(synk): propagate real multi-class gt labels if they ever differ from 1.
    ml_ref[:, 1:2, :] = jnp.where(below, 0, 1).astype(jnp.int32)

    # torchvision clamps matched_idxs to min=0 *after* thresholding before the GT
    # gather, so background proposals encode against gt_boxes[0].
    clampedf = jnp.maximum(matched_idxf, 0.0)                             # (B, 1, tP)
    one_hot = (rowf == clampedf).astype(jnp.float32)                      # (B, G, tP)
    mgx1 = jnp.sum(one_hot * gx1, axis=1, keepdims=True)                  # (B, 1, tP)
    mgy1 = jnp.sum(one_hot * gy1, axis=1, keepdims=True)
    mgx2 = jnp.sum(one_hot * gx2, axis=1, keepdims=True)
    mgy2 = jnp.sum(one_hot * gy2, axis=1, keepdims=True)

    # BoxCoder.encode with weights (10, 10, 5, 5) — direct sliced stores (no concat).
    ex_w = px2 - px1
    ex_h = py2 - py1
    ex_cx = px1 + 0.5 * ex_w
    ex_cy = py1 + 0.5 * ex_h
    gt_w = mgx2 - mgx1
    gt_h = mgy2 - mgy1
    gt_cx = mgx1 + 0.5 * gt_w
    gt_cy = mgy1 + 0.5 * gt_h
    reg_ref[:, 0:1, :] = 10.0 * (gt_cx - ex_cx) / ex_w
    reg_ref[:, 1:2, :] = 10.0 * (gt_cy - ex_cy) / ex_h
    reg_ref[:, 2:3, :] = 5.0 * jnp.log(gt_w / ex_w)
    reg_ref[:, 3:4, :] = 5.0 * jnp.log(gt_h / ex_h)


def assign_and_encode(gt_boxes, proposals):
    """gt_boxes (B, G, 4), proposals (B, P, 4) ->
       iou (B, G, P), matched_idxs (B, P) int32 (-1 = background),
       labels (B, P) int32 (0 bg / 1 fg), regression targets (B, 4, P) SoA."""
    B, G, _ = gt_boxes.shape
    _, P, _ = proposals.shape
    Pp, tP = _lane_tiles(P)
    prop_t = _pad_lanes_boxes_t(jnp.transpose(proposals, (0, 2, 1)), Pp)   # (B, 4, Pp)

    iou, ml, reg_t = pl.pallas_call(
        _assign_encode_kernel,
        out_shape=(jax.ShapeDtypeStruct((B, G, Pp), jnp.float32),
                   jax.ShapeDtypeStruct((B, 2, Pp), jnp.int32),
                   jax.ShapeDtypeStruct((B, 4, Pp), jnp.float32)),
        grid=(Pp // tP,),
        in_specs=[pl.BlockSpec((B, G, 4), lambda i: (0, 0, 0)),
                  pl.BlockSpec((B, 4, tP), lambda i: (0, 0, i))],
        out_specs=(pl.BlockSpec((B, G, tP), lambda i: (0, 0, i)),
                   pl.BlockSpec((B, 2, tP), lambda i: (0, 0, i)),
                   pl.BlockSpec((B, 4, tP), lambda i: (0, 0, i))),
        compiler_params=pltpu.CompilerParams(dimension_semantics=("parallel",)),
    )(gt_boxes, prop_t)

    iou = iou[:, :, :P]
    matched_idxs = ml[:, 0, :P]
    labels = ml[:, 1, :P]
    regression_targets_soa = reg_t[:, :, :P]                               # (B, 4, P)
    return iou, matched_idxs, labels, regression_targets_soa


# ----------------------------------------------------------------------------
# 2) Fused postprocess compute: softmax + BoxCoder.decode + clip_boxes_to_image
#    Layout: logits (C, Mp), regression (4, C, Mp) coordinate planes,
#    proposals (4, Mp) SoA. Class axis is vectorized across sublanes; proposal
#    geometry is broadcast (1, Mp) -> no per-class unroll, no jnp.repeat.
# ----------------------------------------------------------------------------
_BBOX_XFORM_CLIP = math.log(1000.0 / 16.0)


def _postprocess_kernel(imgsz_ref, logits_ref, reg_ref, prop_ref, scores_ref, boxes_ref):
    h = imgsz_ref[0]
    w = imgsz_ref[1]

    # softmax over classes: classes on sublanes, proposals on lanes (lane-dense)
    lg = logits_ref[...]                                    # (C, tM)
    e = jnp.exp(lg - jnp.max(lg, axis=0, keepdims=True))
    scores_ref[...] = e * pl.reciprocal(jnp.sum(e, axis=0, keepdims=True), approx=False)

    pr = prop_ref[...]                                      # (4, tM)
    widths = pr[2:3, :] - pr[0:1, :]
    heights = pr[3:4, :] - pr[1:2, :]
    ctr_x = pr[0:1, :] + 0.5 * widths
    ctr_y = pr[1:2, :] + 0.5 * heights

    # class-parallel decode: each plane is a sublane-dense (C, tM) slab
    dx = reg_ref[0] / 10.0
    dy = reg_ref[1] / 10.0
    dw = jnp.minimum(reg_ref[2] / 5.0, _BBOX_XFORM_CLIP)
    dh = jnp.minimum(reg_ref[3] / 5.0, _BBOX_XFORM_CLIP)
    pcx = dx * widths + ctr_x
    pcy = dy * heights + ctr_y
    pw = jnp.exp(dw) * widths
    ph = jnp.exp(dh) * heights
    # direct per-plane stores (no sublane concatenate / extra VMEM copy)
    boxes_ref[0] = jnp.clip(pcx - 0.5 * pw, 0.0, w)
    boxes_ref[1] = jnp.clip(pcy - 0.5 * ph, 0.0, h)
    boxes_ref[2] = jnp.clip(pcx + 0.5 * pw, 0.0, w)
    boxes_ref[3] = jnp.clip(pcy + 0.5 * ph, 0.0, h)


def postprocess_detections(logits, box_regression, proposals_flat, image_size_hw):
    """logits (M, C), box_regression (M, C*4), proposals_flat (M, 4),
       image_size_hw (2,) -> scores (M, C), pred_boxes (M, C, 4) decoded+clipped."""
    M, C = logits.shape
    Mp, tM = _lane_tiles(M)
    logits_t = jnp.pad(logits.T, ((0, 0), (0, Mp - M)))                          # (C, Mp)
    reg_t = jnp.pad(box_regression.reshape(M, C, 4).transpose(2, 1, 0),
                    ((0, 0), (0, 0), (0, Mp - M)))                               # (4, C, Mp)
    prop_t = _pad_lanes_boxes_t(proposals_flat.T, Mp)                            # (4, Mp)

    scores_t, boxes_t = pl.pallas_call(
        _postprocess_kernel,
        out_shape=(jax.ShapeDtypeStruct((C, Mp), jnp.float32),
                   jax.ShapeDtypeStruct((4, C, Mp), jnp.float32)),
        grid=(Mp // tM,),
        in_specs=[pl.BlockSpec(memory_space=pltpu.MemorySpace.SMEM),
                  pl.BlockSpec((C, tM), lambda i: (0, i)),
                  pl.BlockSpec((4, C, tM), lambda i: (0, 0, i)),
                  pl.BlockSpec((4, tM), lambda i: (0, i))],
        out_specs=(pl.BlockSpec((C, tM), lambda i: (0, i)),
                   pl.BlockSpec((4, C, tM), lambda i: (0, 0, i))),
        compiler_params=pltpu.CompilerParams(dimension_semantics=("parallel",)),
    )(image_size_hw, logits_t, reg_t, prop_t)

    scores = scores_t[:, :M].T                                                   # (M, C)
    pred_boxes = boxes_t[:, :, :M].transpose(2, 1, 0)                            # (M, C, 4)
    return scores, pred_boxes


# ----------------------------------------------------------------------------
# 3) Box-feature projection matmul (representation_size=2048 -> emb) feeding the
#    BoxDescriber. bf16 operands (MXU-native), f32 accumulation, gridded over M
#    so x/out tiles double-buffer while the weight stays VMEM-resident.
#    VMEM budget per step (tm=256, K=2048, N=256, bf16): 2x1 MiB x-tiles +
#    1 MiB weight + 2x0.25 MiB out -> comfortably under v7x's 64 MiB / the
#    32 MiB scoped limit requested below.
# ----------------------------------------------------------------------------
def _proj_kernel(x_ref, w_ref, b_ref, o_ref):
    o_ref[...] = (jnp.dot(x_ref[...], w_ref[...], preferred_element_type=jnp.float32)
                  + b_ref[...]).astype(o_ref.dtype)


def feature_project(x, w, b, *, tm=256):
    M, K = x.shape
    _, N = w.shape
    Mp = _round_up(M, 8)
    tm = min(tm, Mp)
    Mp = _round_up(Mp, tm)
    x_p = jnp.pad(x, ((0, Mp - M), (0, 0))).astype(jnp.bfloat16)
    w_bf = w.astype(jnp.bfloat16)
    out = pl.pallas_call(
        _proj_kernel,
        out_shape=jax.ShapeDtypeStruct((Mp, N), jnp.float32),
        grid=(Mp // tm,),
        in_specs=[pl.BlockSpec((tm, K), lambda i: (i, 0)),
                  pl.BlockSpec((K, N), lambda i: (0, 0)),    # weight resident
                  pl.BlockSpec((1, N), lambda i: (0, 0))],
        out_specs=pl.BlockSpec((tm, N), lambda i: (i, 0)),
        compiler_params=pltpu.CompilerParams(
            dimension_semantics=("parallel",),
            vmem_limit_bytes=32 * 1024 * 1024),
    )(x_p, w_bf, b)
    return out[:M]


# ----------------------------------------------------------------------------
# Wrapper mimicking the defined compute of MyDenseCap.forward
# ----------------------------------------------------------------------------
def mydensecap_forward(proposals, gt_boxes, box_features, logits, box_regression,
                       w_proj, b_proj, image_size_hw):
    B, P, _ = proposals.shape
    M = B * P

    # --- assign_targets_to_proposals (Matcher 0.5/0.5) + BoxCoder.encode, fused ---
    iou, matched_idxs, labels, reg_soa = assign_and_encode(gt_boxes, proposals)
    regression_targets = jnp.transpose(reg_soa, (0, 2, 1)).reshape(M, 4)
    # TODO(synk): BalancedPositiveNegativeSampler(512, 0.25) subsampling (random
    # nonzero selection) has no clean static-shape Pallas equivalent.

    # --- BoxDescriber input feature projection ---
    projected = feature_project(box_features, w_proj, b_proj)
    # TODO(synk): BoxDescriber LSTM caption decode loop is not defined in the
    # provided source; only the dense feature-projection hot path is implemented.

    # --- postprocess_detections: softmax + decode + clip, fused ---
    scores, pred_boxes = postprocess_detections(
        logits, box_regression, proposals.reshape(M, 4), image_size_hw)
    # TODO(synk): score-threshold filtering, remove_small_boxes and batched NMS are
    # data-dependent set operations with no static-shape Pallas equivalent.

    return dict(iou=iou,                       # (B, G, P) match-quality matrix
                matched_idxs=matched_idxs,     # (B, P), -1 for background
                labels=labels,                 # (B, P), 0 bg / 1 fg
                regression_targets=regression_targets,
                projected_features=projected,
                pred_scores=scores, pred_boxes=pred_boxes)


# ----------------------------------------------------------------------------
# main
# ----------------------------------------------------------------------------
if __name__ == "__main__":
    key = jax.random.PRNGKey(0)
    k1, k2, k3, k4, k5, k6 = jax.random.split(key, 6)

    B, P, G = 2, 16, 8           # images, proposals/img, gt boxes/img
    FEAT, EMB = 2048, 256        # representation_size (fixed in module) -> emb
    C = 2                        # num classes incl. background
    IMG_H, IMG_W = 64.0, 64.0

    def rand_boxes(k, n):
        xy = jax.random.uniform(k, (B, n, 2), minval=0.0, maxval=40.0)
        wh = jax.random.uniform(jax.random.fold_in(k, 1), (B, n, 2), minval=4.0, maxval=24.0)
        return jnp.concatenate([xy, xy + wh], axis=-1).astype(jnp.float32)

    proposals = rand_boxes(k1, P)
    gt_boxes = rand_boxes(k2, G)
    box_features = jax.random.normal(k3, (B * P, FEAT), jnp.float32)
    logits = jax.random.normal(k4, (B * P, C), jnp.float32)
    box_regression = 0.1 * jax.random.normal(k5, (B * P, 4 * C), jnp.float32)

    # deterministic parameters for the BoxDescriber feature projection
    w_proj = (0.02 * jax.random.normal(k6, (FEAT, EMB))).astype(jnp.float32)
    b_proj = jnp.zeros((1, EMB), jnp.float32)
    image_size_hw = jnp.array([IMG_H, IMG_W], jnp.float32)

    out = mydensecap_forward(proposals, gt_boxes, box_features, logits,
                             box_regression, w_proj, b_proj, image_size_hw)
    jax.block_until_ready(out)

    # ---- plain-JAX references ----
    def ref_iou(gt, pr):   # (G, P) match-quality orientation (box_iou(gt, proposals))
        lt = jnp.maximum(gt[:, None, :2], pr[None, :, :2])
        rb = jnp.minimum(gt[:, None, 2:], pr[None, :, 2:])
        wh = jnp.maximum(rb - lt, 0.0)
        inter = wh[..., 0] * wh[..., 1]
        ag = (gt[:, 2] - gt[:, 0]) * (gt[:, 3] - gt[:, 1])
        ap = (pr[:, 2] - pr[:, 0]) * (pr[:, 3] - pr[:, 1])
        return inter / (ag[:, None] + ap[None, :] - inter)

    iou_ref = jnp.stack([ref_iou(gt_boxes[b], proposals[b]) for b in range(B)])
    assert jnp.allclose(out["iou"], iou_ref, atol=1e-5)

    # Matcher reference driven from the kernel IoU (exact integer comparison)
    mv = jnp.max(out["iou"], axis=1)
    am = jnp.argmax(out["iou"], axis=1).astype(jnp.int32)
    below = mv < 0.5
    assert bool(jnp.all(out["matched_idxs"] == jnp.where(below, -1, am)))
    assert bool(jnp.all(out["labels"] == jnp.where(below, 0, 1)))

    # BoxCoder.encode reference (weights 10, 10, 5, 5); torchvision gathers
    # gt_boxes[matched_idxs.clamp(min=0)], so background rows use gt box 0.
    clamped = jnp.maximum(out["matched_idxs"], 0)
    mgt = jnp.take_along_axis(gt_boxes, clamped[:, :, None], axis=1).reshape(B * P, 4)
    pr = proposals.reshape(B * P, 4)
    ex_w = pr[:, 2] - pr[:, 0]; ex_h = pr[:, 3] - pr[:, 1]
    ex_cx = pr[:, 0] + 0.5 * ex_w; ex_cy = pr[:, 1] + 0.5 * ex_h
    g_w = mgt[:, 2] - mgt[:, 0]; g_h = mgt[:, 3] - mgt[:, 1]
    g_cx = mgt[:, 0] + 0.5 * g_w; g_cy = mgt[:, 1] + 0.5 * g_h
    reg_ref = jnp.stack([10.0 * (g_cx - ex_cx) / ex_w, 10.0 * (g_cy - ex_cy) / ex_h,
                         5.0 * jnp.log(g_w / ex_w), 5.0 * jnp.log(g_h / ex_h)], axis=1)
    assert jnp.allclose(out["regression_targets"], reg_ref, atol=1e-4, rtol=1e-4)

    # softmax reference
    assert jnp.allclose(out["pred_scores"], jax.nn.softmax(logits, axis=-1), atol=1e-5)

    # projection reference against the bf16-quantized operands the kernel uses
    # (accumulation stays f32 in the kernel via preferred_element_type)
    x_q = box_features.astype(jnp.bfloat16).astype(jnp.float32)
    w_q = w_proj.astype(jnp.bfloat16).astype(jnp.float32)
    assert jnp.allclose(out["projected_features"], x_q @ w_q + b_proj,
                        atol=1e-2, rtol=1e-3)

    # decode + clip reference
    reg = box_regression.reshape(B * P, C, 4)
    w_ = ex_w[:, None]; h_ = ex_h[:, None]
    cx = ex_cx[:, None]; cy = ex_cy[:, None]
    dx = reg[..., 0] / 10.0; dy = reg[..., 1] / 10.0
    dw = jnp.minimum(reg[..., 2] / 5.0, math.log(1000.0 / 16.0))
    dh = jnp.minimum(reg[..., 3] / 5.0, math.log(1000.0 / 16.0))
    pcx = dx * w_ + cx; pcy = dy * h_ + cy
    pw = jnp.exp(dw) * w_; ph = jnp.exp(dh) * h_
    bx_ref = jnp.stack([jnp.clip(pcx - 0.5 * pw, 0.0, IMG_W),
                        jnp.clip(pcy - 0.5 * ph, 0.0, IMG_H),
                        jnp.clip(pcx + 0.5 * pw, 0.0, IMG_W),
                        jnp.clip(pcy + 0.5 * ph, 0.0, IMG_H)], axis=-1)
    assert jnp.allclose(out["pred_boxes"], bx_ref, atol=1e-3)

    print("KERNEL_OK")
</pallas_src>

<mosaic_0001>
module attributes {stable_mosaic.version = 11 : i64} {
  func.func @_assign_encode_kernel(%arg0: i32, %arg1: memref<2x8x4xf32, #tpu.memory_space<vmem>>, %arg2: memref<2x4x128xf32, #tpu.memory_space<vmem>>, %arg3: memref<2x8x128xf32, #tpu.memory_space<vmem>>, %arg4: memref<2x2x128xi32, #tpu.memory_space<vmem>>, %arg5: memref<2x4x128xf32, #tpu.memory_space<vmem>>) attributes {dimension_semantics = [#tpu.dimension_semantics<parallel>], iteration_bounds = array<i64: 1>, scalar_prefetch = 0 : i64, scratch_operands = 0 : i64, tpu.core_type = #tpu.core_type<tc>, window_params = [{pipeline_mode = #tpu.pipeline_mode<synchronous>, transform_indices = @transform_0, window_bounds = array<i64: 2, 8, 4>}, {transform_indices = @transform_1, window_bounds = array<i64: 2, 4, 128>}, {transform_indices = @transform_2, window_bounds = array<i64: 2, 8, 128>}, {transform_indices = @transform_3, window_bounds = array<i64: 2, 2, 128>}, {transform_indices = @transform_4, window_bounds = array<i64: 2, 4, 128>}]} {
    %c0 = arith.constant 0 : index
    %c0_0 = arith.constant 0 : index
    %c0_1 = arith.constant 0 : index
    %0 = vector.load %arg1[%c0, %c0_0, %c0_1] : memref<2x8x4xf32, #tpu.memory_space<vmem>>, vector<2x8x4xf32>
    %c0_2 = arith.constant 0 : index
    %c0_3 = arith.constant 0 : index
    %c0_4 = arith.constant 0 : index
    %1 = vector.load %arg2[%c0_2, %c0_3, %c0_4] : memref<2x4x128xf32, #tpu.memory_space<vmem>>, vector<2x4x128xf32>
    %2 = vector.extract_strided_slice %0 {offsets = [0, 0, 0], sizes = [2, 8, 1], strides = [1, 1, 1]} : vector<2x8x4xf32> to vector<2x8x1xf32>
    %3 = vector.extract_strided_slice %0 {offsets = [0, 0, 1], sizes = [2, 8, 1], strides = [1, 1, 1]} : vector<2x8x4xf32> to vector<2x8x1xf32>
    %4 = vector.extract_strided_slice %0 {offsets = [0, 0, 2], sizes = [2, 8, 1], strides = [1, 1, 1]} : vector<2x8x4xf32> to vector<2x8x1xf32>
    %5 = vector.extract_strided_slice %0 {offsets = [0, 0, 3], sizes = [2, 8, 1], strides = [1, 1, 1]} : vector<2x8x4xf32> to vector<2x8x1xf32>
    %6 = vector.extract_strided_slice %1 {offsets = [0, 0, 0], sizes = [2, 1, 128], strides = [1, 1, 1]} : vector<2x4x128xf32> to vector<2x1x128xf32>
    %7 = vector.extract_strided_slice %1 {offsets = [0, 1, 0], sizes = [2, 1, 128], strides = [1, 1, 1]} : vector<2x4x128xf32> to vector<2x1x128xf32>
    %8 = vector.extract_strided_slice %1 {offsets = [0, 2, 0], sizes = [2, 1, 128], strides = [1, 1, 1]} : vector<2x4x128xf32> to vector<2x1x128xf32>
    %9 = vector.extract_strided_slice %1 {offsets = [0, 3, 0], sizes = [2, 1, 128], strides = [1, 1, 1]} : vector<2x4x128xf32> to vector<2x1x128xf32>
    %10 = vector.broadcast %6 : vector<2x1x128xf32> to vector<2x8x128xf32>
    %11 = vector.broadcast %2 : vector<2x8x1xf32> to vector<2x8x128xf32>
    %12 = arith.maximumf %10, %11 : vector<2x8x128xf32>
    %13 = vector.broadcast %7 : vector<2x1x128xf32> to vector<2x8x128xf32>
    %14 = vector.broadcast %3 : vector<2x8x1xf32> to vector<2x8x128xf32>
    %15 = arith.maximumf %13, %14 : vector<2x8x128xf32>
    %16 = vector.broadcast %8 : vector<2x1x128xf32> to vector<2x8x128xf32>
    %17 = vector.broadcast %4 : vector<2x8x1xf32> to vector<2x8x128xf32>
    %18 = arith.minimumf %16, %17 : vector<2x8x128xf32>
    %19 = vector.broadcast %9 : vector<2x1x128xf32> to vector<2x8x128xf32>
    %20 = vector.broadcast %5 : vector<2x8x1xf32> to vector<2x8x128xf32>
    %21 = arith.minimumf %19, %20 : vector<2x8x128xf32>
    %22 = arith.subf %18, %12 : vector<2x8x128xf32>
    %cst = arith.constant 0.000000e+00 : f32
    %23 = vector.broadcast %cst : f32 to vector<2x8x128xf32>
    %24 = arith.maximumf %22, %23 : vector<2x8x128xf32>
    %25 = arith.subf %21, %15 : vector<2x8x128xf32>
    %cst_5 = arith.constant 0.000000e+00 : f32
    %26 = vector.broadcast %cst_5 : f32 to vector<2x8x128xf32>
    %27 = arith.maximumf %25, %26 : vector<2x8x128xf32>
    %28 = arith.mulf %24, %27 : vector<2x8x128xf32>
    %29 = arith.subf %4, %2 : vector<2x8x1xf32>
    %30 = arith.subf %5, %3 : vector<2x8x1xf32>
    %31 = arith.mulf %29, %30 : vector<2x8x1xf32>
    %32 = arith.subf %8, %6 : vector<2x1x128xf32>
    %33 = arith.subf %9, %7 : vector<2x1x128xf32>
    %34 = arith.mulf %32, %33 : vector<2x1x128xf32>
    %35 = vector.broadcast %34 : vector<2x1x128xf32> to vector<2x8x128xf32>
    %36 = vector.broadcast %31 : vector<2x8x1xf32> to vector<2x8x128xf32>
    %37 = arith.addf %35, %36 : vector<2x8x128xf32>
    %38 = arith.subf %37, %28 : vector<2x8x128xf32>
    %39 = arith.divf %28, %38 : vector<2x8x128xf32>
    %c0_6 = arith.constant 0 : index
    %c0_7 = arith.constant 0 : index
    %c0_8 = arith.constant 0 : index
    %40 = vector.load %arg3[%c0_6, %c0_7, %c0_8] : memref<2x8x128xf32, #tpu.memory_space<vmem>>, vector<2x8x128xf32>
    tpu.vector_store %arg3[%c0_6, %c0_7, %c0_8], %39 {strides = array<i32>} : memref<2x8x128xf32, #tpu.memory_space<vmem>>, vector<2x8x128xf32>,
    %cst_9 = arith.constant dense<0xFF800000> : vector<2x128xf32>
    %41 = vector.multi_reduction <maximumf>, %39, %cst_9 [1] : vector<2x8x128xf32> to vector<2x128xf32>
    %42 = vector.shape_cast %41 : vector<2x128xf32> to vector<2x1x128xf32>
    %43 = tpu.iota {dimensions = array<i32: 1>} : vector<2x8x128xi32>
    %44 = arith.sitofp %43 : vector<2x8x128xi32> to vector<2x8x128xf32>
    %45 = vector.broadcast %42 : vector<2x1x128xf32> to vector<2x8x128xf32>
    %46 = arith.cmpf oeq, %39, %45 : vector<2x8x128xf32>
    %cst_10 = arith.constant 8.000000e+00 : f32
    %47 = vector.broadcast %cst_10 : f32 to vector<2x8x128xf32>
    %48 = arith.select %46, %44, %47 : vector<2x8x128xi1>, vector<2x8x128xf32>
    %cst_11 = arith.constant dense<0x7F800000> : vector<2x128xf32>
    %49 = vector.multi_reduction <minimumf>, %48, %cst_11 [1] : vector<2x8x128xf32> to vector<2x128xf32>
    %50 = vector.shape_cast %49 : vector<2x128xf32> to vector<2x1x128xf32>
    %cst_12 = arith.constant 5.000000e-01 : f32
    %51 = vector.broadcast %cst_12 : f32 to vector<2x1x128xf32>
    %52 = arith.cmpf olt, %42, %51 : vector<2x1x128xf32>
    %cst_13 = arith.constant -1.000000e+00 : f32
    %53 = vector.broadcast %cst_13 : f32 to vector<2x1x128xf32>
    %54 = arith.select %52, %53, %50 : vector<2x1x128xi1>, vector<2x1x128xf32>
    %55 = arith.fptosi %54 : vector<2x1x128xf32> to vector<2x1x128xi32>
    %c0_14 = arith.constant 0 : index
    %c0_15 = arith.constant 0 : index
    %c0_16 = arith.constant 0 : index
    %56 = vector.load %arg4[%c0_14, %c0_15, %c0_16] : memref<2x2x128xi32, #tpu.memory_space<vmem>>, vector<2x1x128xi32>
    tpu.vector_store %arg4[%c0_14, %c0_15, %c0_16], %55 {strides = array<i32>} : memref<2x2x128xi32, #tpu.memory_space<vmem>>, vector<2x1x128xi32>,
    %c0_i32 = arith.constant 0 : i32
    %c1_i32 = arith.constant 1 : i32
    %57 = vector.broadcast %c0_i32 : i32 to vector<2x1x128xi32>
    %58 = vector.broadcast %c1_i32 : i32 to vector<2x1x128xi32>
    %59 = arith.select %52, %57, %58 : vector<2x1x128xi1>, vector<2x1x128xi32>
    %c0_17 = arith.constant 0 : index
    %c1 = arith.constant 1 : index
    %c0_18 = arith.constant 0 : index
    %60 = vector.load %arg4[%c0_17, %c1, %c0_18] : memref<2x2x128xi32, #tpu.memory_space<vmem>>, vector<2x1x128xi32>
    tpu.vector_store %arg4[%c0_17, %c1, %c0_18], %59 {strides = array<i32>} : memref<2x2x128xi32, #tpu.memory_space<vmem>>, vector<2x1x128xi32>,
    %cst_19 = arith.constant 0.000000e+00 : f32
    %61 = vector.broadcast %cst_19 : f32 to vector<2x1x128xf32>
    %62 = arith.maximumf %54, %61 : vector<2x1x128xf32>
    %63 = vector.broadcast %62 : vector<2x1x128xf32> to vector<2x8x128xf32>
    %64 = arith.cmpf oeq, %44, %63 : vector<2x8x128xf32>
    %65 = arith.extui %64 : vector<2x8x128xi1> to vector<2x8x128xi32>
    %66 = arith.sitofp %65 : vector<2x8x128xi32> to vector<2x8x128xf32>
    %67 = vector.broadcast %2 : vector<2x8x1xf32> to vector<2x8x128xf32>
    %68 = arith.mulf %66, %67 : vector<2x8x128xf32>
    %cst_20 = arith.constant dense<0.000000e+00> : vector<2x128xf32>
    %69 = vector.multi_reduction <add>, %68, %cst_20 [1] : vector<2x8x128xf32> to vector<2x128xf32>
    %70 = vector.shape_cast %69 : vector<2x128xf32> to vector<2x1x128xf32>
    %71 = vector.broadcast %3 : vector<2x8x1xf32> to vector<2x8x128xf32>
    %72 = arith.mulf %66, %71 : vector<2x8x128xf32>
    %cst_21 = arith.constant dense<0.000000e+00> : vector<2x128xf32>
    %73 = vector.multi_reduction <add>, %72, %cst_21 [1] : vector<2x8x128xf32> to vector<2x128xf32>
    %74 = vector.shape_cast %73 : vector<2x128xf32> to vector<2x1x128xf32>
    %75 = vector.broadcast %4 : vector<2x8x1xf32> to vector<2x8x128xf32>
    %76 = arith.mulf %66, %75 : vector<2x8x128xf32>
    %cst_22 = arith.constant dense<0.000000e+00> : vector<2x128xf32>
    %77 = vector.multi_reduction <add>, %76, %cst_22 [1] : vector<2x8x128xf32> to vector<2x128xf32>
    %78 = vector.shape_cast %77 : vector<2x128xf32> to vector<2x1x128xf32>
    %79 = vector.broadcast %5 : vector<2x8x1xf32> to vector<2x8x128xf32>
    %80 = arith.mulf %66, %79 : vector<2x8x128xf32>
    %cst_23 = arith.constant dense<0.000000e+00> : vector<2x128xf32>
    %81 = vector.multi_reduction <add>, %80, %cst_23 [1] : vector<2x8x128xf32> to vector<2x128xf32>
    %82 = vector.shape_cast %81 : vector<2x128xf32> to vector<2x1x128xf32>
    %83 = arith.subf %8, %6 : vector<2x1x128xf32>
    %84 = arith.subf %9, %7 : vector<2x1x128xf32>
    %cst_24 = arith.constant 5.000000e-01 : f32
    %85 = vector.broadcast %cst_24 : f32 to vector<2x1x128xf32>
    %86 = arith.mulf %85, %83 : vector<2x1x128xf32>
    %87 = arith.addf %6, %86 : vector<2x1x128xf32>
    %cst_25 = arith.constant 5.000000e-01 : f32
    %88 = vector.broadcast %cst_25 : f32 to vector<2x1x128xf32>
    %89 = arith.mulf %88, %84 : vector<2x1x128xf32>
    %90 = arith.addf %7, %89 : vector<2x1x128xf32>
    %91 = arith.subf %78, %70 : vector<2x1x128xf32>
    %92 = arith.subf %82, %74 : vector<2x1x128xf32>
    %cst_26 = arith.constant 5.000000e-01 : f32
    %93 = vector.broadcast %cst_26 : f32 to vector<2x1x128xf32>
    %94 = arith.mulf %93, %91 : vector<2x1x128xf32>
    %95 = arith.addf %70, %94 : vector<2x1x128xf32>
    %cst_27 = arith.constant 5.000000e-01 : f32
    %96 = vector.broadcast %cst_27 : f32 to vector<2x1x128xf32>
    %97 = arith.mulf %96, %92 : vector<2x1x128xf32>
    %98 = arith.addf %74, %97 : vector<2x1x128xf32>
    %99 = arith.subf %95, %87 : vector<2x1x128xf32>
    %cst_28 = arith.constant 1.000000e+01 : f32
    %100 = vector.broadcast %cst_28 : f32 to vector<2x1x128xf32>
    %101 = arith.mulf %100, %99 : vector<2x1x128xf32>
    %102 = arith.divf %101, %83 : vector<2x1x128xf32>
    %c0_29 = arith.constant 0 : index
    %c0_30 = arith.constant 0 : index
    %c0_31 = arith.constant 0 : index
    %103 = vector.load %arg5[%c0_29, %c0_30, %c0_31] : memref<2x4x128xf32, #tpu.memory_space<vmem>>, vector<2x1x128xf32>
    tpu.vector_store %arg5[%c0_29, %c0_30, %c0_31], %102 {strides = array<i32>} : memref<2x4x128xf32, #tpu.memory_space<vmem>>, vector<2x1x128xf32>,
    %104 = arith.subf %98, %90 : vector<2x1x128xf32>
    %cst_32 = arith.constant 1.000000e+01 : f32
    %105 = vector.broadcast %cst_32 : f32 to vector<2x1x128xf32>
    %106 = arith.mulf %105, %104 : vector<2x1x128xf32>
    %107 = arith.divf %106, %84 : vector<2x1x128xf32>
    %c0_33 = arith.constant 0 : index
    %c1_34 = arith.constant 1 : index
    %c0_35 = arith.constant 0 : index
    %108 = vector.load %arg5[%c0_33, %c1_34, %c0_35] : memref<2x4x128xf32, #tpu.memory_space<vmem>>, vector<2x1x128xf32>
    tpu.vector_store %arg5[%c0_33, %c1_34, %c0_35], %107 {strides = array<i32>} : memref<2x4x128xf32, #tpu.memory_space<vmem>>, vector<2x1x128xf32>,
    %109 = arith.divf %91, %83 : vector<2x1x128xf32>
    %110 = math.log %109 : vector<2x1x128xf32>
    %cst_36 = arith.constant 5.000000e+00 : f32
    %111 = vector.broadcast %cst_36 : f32 to vector<2x1x128xf32>
    %112 = arith.mulf %111, %110 : vector<2x1x128xf32>
    %c0_37 = arith.constant 0 : index
    %c2 = arith.constant 2 : index
    %c0_38 = arith.constant 0 : index
    %113 = vector.load %arg5[%c0_37, %c2, %c0_38] : memref<2x4x128xf32, #tpu.memory_space<vmem>>, vector<2x1x128xf32>
    tpu.vector_store %arg5[%c0_37, %c2, %c0_38], %112 {strides = array<i32>} : memref<2x4x128xf32, #tpu.memory_space<vmem>>, vector<2x1x128xf32>,
    %114 = arith.divf %92, %84 : vector<2x1x128xf32>
    %115 = math.log %114 : vector<2x1x128xf32>
    %cst_39 = arith.constant 5.000000e+00 : f32
    %116 = vector.broadcast %cst_39 : f32 to vector<2x1x128xf32>
    %117 = arith.mulf %116, %115 : vector<2x1x128xf32>
    %c0_40 = arith.constant 0 : index
    %c3 = arith.constant 3 : index
    %c0_41 = arith.constant 0 : index
    %118 = vector.load %arg5[%c0_40, %c3, %c0_41] : memref<2x4x128xf32, #tpu.memory_space<vmem>>, vector<2x1x128xf32>
    tpu.vector_store %arg5[%c0_40, %c3, %c0_41], %117 {strides = array<i32>} : memref<2x4x128xf32, #tpu.memory_space<vmem>>, vector<2x1x128xf32>,
    return
  }
  func.func @transform_0(%arg0: i32) -> (i32, i32, i32) {
    %c0_i32 = arith.constant 0 : i32
    %c0_i32_0 = arith.constant 0 : i32
    %c0_i32_1 = arith.constant 0 : i32
    %c0_i32_2 = arith.constant 0 : i32
    return %c0_i32, %c0_i32_0, %c0_i32_1 : i32, i32, i32
  }
  func.func @transform_1(%arg0: i32) -> (i32, i32, i32) {
    %c0_i32 = arith.constant 0 : i32
    %c0_i32_0 = arith.constant 0 : i32
    %c0_i32_1 = arith.constant 0 : i32
    return %c0_i32, %c0_i32_0, %arg0 : i32, i32, i32
  }
  func.func @transform_2(%arg0: i32) -> (i32, i32, i32) {
    %c0_i32 = arith.constant 0 : i32
    %c0_i32_0 = arith.constant 0 : i32
    %c0_i32_1 = arith.constant 0 : i32
    return %c0_i32, %c0_i32_0, %arg0 : i32, i32, i32
  }
  func.func @transform_3(%arg0: i32) -> (i32, i32, i32) {
    %c0_i32 = arith.constant 0 : i32
    %c0_i32_0 = arith.constant 0 : i32
    %c0_i32_1 = arith.constant 0 : i32
    return %c0_i32, %c0_i32_0, %arg0 : i32, i32, i32
  }
  func.func @transform_4(%arg0: i32) -> (i32, i32, i32) {
    %c0_i32 = arith.constant 0 : i32
    %c0_i32_0 = arith.constant 0 : i32
    %c0_i32_1 = arith.constant 0 : i32
    return %c0_i32, %c0_i32_0, %arg0 : i32, i32, i32
  }
}

</mosaic_0001>

<llo_original>
// kernel: tpu_custom_call.1
$region0: #{tpu_custom_call.1}
  #allocation0 [shape = 'u32[]', space=smem, size = 0x4, offset = 0x4, fixed_abs, tag = 'smem constant byte address 0x4 - core index']
  #allocation1 [shape = 'u32[144,128]{1,0:T(1,128)}', space=vmem, size = 0x12000, scoped, tag = 'internal scratch']
  %s0 = inlined_call_operand.vmem [shape: f32[2,8,4], index: 0, kind: input, shape index: {}]
  %s1 = inlined_call_operand.vmem [shape: f32[2,4,128], index: 1, kind: input, shape index: {}]
  %s2 = inlined_call_operand.hbm [shape: f32[2,8,128], index: 2, kind: output, shape index: {0}]
  %s3 = inlined_call_operand.hbm [shape: s32[2,2,128], index: 3, kind: output, shape index: {1}]
  %s4 = inlined_call_operand.hbm [shape: f32[2,4,128], index: 4, kind: output, shape index: {2}]
  %5 = xla_tuple %s2, %s3, %s4
  %s6 = sld [smem:[#allocation0]]
  $region34: #{tpu_custom_call.1} parent=0
    _
  %s8 = ssub.s32 1, %s6
  %s9 = scalar_select 0, %s8, %s6
  $region1: #{tpu_custom_call.1} parent=0
    #allocation2 [shape = 'u8[8192]{0}', space=vmem, size = 0x2000, scoped, tag = 'output window, operand 0, single buffered']
    #allocation3 [shape = 's32[1]{0}', space=sflag, size = 0x4, scoped, tag = 'scoped memory for tpu_custom_call.1']
    #allocation4 [shape = 'u8[2048]{0}', space=vmem, size = 0x800, scoped, tag = 'output window, operand 1, single buffered']
    #allocation5 [shape = 's32[1]{0}', space=sflag, size = 0x4, scoped, tag = 'scoped memory for tpu_custom_call.1']
    #allocation6 [shape = 'u8[4096]{0}', space=vmem, size = 0x1000, scoped, tag = 'output window, operand 2, single buffered']
    %10 = vsyncpa [#allocation3], 0
    %11 = vsyncpa [#allocation5], 0
    // Predicated region
    $region2: #{tpu_custom_call.1} parent=1 // pred_check
      _
    $region3: #{tpu_custom_call.1} parent=1 // pred_check_branch
      %13 = sbr.rel (0) target = $region5
    $region4: #{tpu_custom_call.1} parent=1 // pred_region
      _
    $region5: #{tpu_custom_call.1} parent=1 // pred_fallthru
      _
    // Predicated region
    $region6: #{tpu_custom_call.1} parent=1 // pred_check
      _
    $region7: #{tpu_custom_call.1} parent=1 // pred_check_branch
      %15 = sbr.rel (0) target = $region9
    $region8: #{tpu_custom_call.1} parent=1 // pred_region
      _
    $region9: #{tpu_custom_call.1} parent=1 // pred_fallthru
      _
    %v16 = vld [vmem:[%s0] sm:$0xff]
    %v17 = vld [vmem:[%s0 + $0x8] sm:$0xff]
    %v18 = vld [vmem:[%s1] sm:$0xf]
    %v19 = vld [vmem:[%s1 + $0x4] sm:$0xf]
    %v20 = vlaneseq
    %v21 = vshrl.u32 %v20, 7
    %v22 = vsub.s32 0, %v21
    %v23 = vrot.slane %v18, %v22
    %v24 = vlaneseq
    %v25 = vshrl.u32 %v24, 7
    %v26 = vsub.s32 0, %v25
    %v27 = vrot.slane %v19, %v26
    %29 = vset.pattern.permute.xlu0 0
    %30 = vperm.xlu0 %29, %v16
    %v31 = vpop.permute.xlu0 %30
    %34 = vset.pattern.permute.xlu0 0
    %35 = vperm.xlu0 %34, %v17
    %v36 = vpop.permute.xlu0 %35
    %v38 = vmax.f32 %v23, %v31
    %v39 = vmax.f32 %v27, %v36
    %v40 = vlaneseq
    %v41 = vshrl.u32 %v40, 7
    %v42 = vsub.s32 1, %v41
    %v43 = vrot.slane %v18, %v42
    %v44 = vlaneseq
    %v45 = vshrl.u32 %v44, 7
    %v46 = vsub.s32 1, %v45
    %v47 = vrot.slane %v19, %v46
    %48 = vset.pattern.permute.xlu0 1
    %49 = vperm.xlu0 %48, %v16
    %v50 = vpop.permute.xlu0 %49
    %52 = vset.pattern.permute.xlu0 1
    %53 = vperm.xlu0 %52, %v17
    %v54 = vpop.permute.xlu0 %53
    %v56 = vmax.f32 %v43, %v50
    %v57 = vmax.f32 %v47, %v54
    %v58 = vlaneseq
    %v59 = vshrl.u32 %v58, 7
    %v60 = vsub.s32 2, %v59
    %v61 = vrot.slane %v18, %v60
    %v62 = vlaneseq
    %v63 = vshrl.u32 %v62, 7
    %v64 = vsub.s32 2, %v63
    %v65 = vrot.slane %v19, %v64
    %66 = vset.pattern.permute.xlu0 2
    %67 = vperm.xlu0 %66, %v16
    %v68 = vpop.permute.xlu0 %67
    %70 = vset.pattern.permute.xlu0 2
    %71 = vperm.xlu0 %70, %v17
    %v72 = vpop.permute.xlu0 %71
    %v74 = vmin.f32 %v61, %v68
    %v75 = vmin.f32 %v65, %v72
    %v76 = vlaneseq
    %v77 = vshrl.u32 %v76, 7
    %v78 = vsub.s32 3, %v77
    %v79 = vrot.slane %v18, %v78
    %v80 = vlaneseq
    %v81 = vshrl.u32 %v80, 7
    %v82 = vsub.s32 3, %v81
    %v83 = vrot.slane %v19, %v82
    %84 = vset.pattern.permute.xlu0 3
    %85 = vperm.xlu0 %84, %v16
    %v86 = vpop.permute.xlu0 %85
    %88 = vset.pattern.permute.xlu0 3
    %89 = vperm.xlu0 %88, %v17
    %v90 = vpop.permute.xlu0 %89
    %v92 = vmin.f32 %v79, %v86
    %v93 = vmin.f32 %v83, %v90
    %v94 = vsub.f32 %v74, %v38
    %v95 = vsub.f32 %v75, %v39
    %v96 = vmax.f32 %v94, 0.0
    %v97 = vmax.f32 %v95, 0.0
    %v98 = vsub.f32 %v92, %v56
    %v99 = vsub.f32 %v93, %v57
    %v100 = vmax.f32 %v98, 0.0
    %v101 = vmax.f32 %v99, 0.0
    %v102 = vmul.f32 %v96, %v100
    %v103 = vmul.f32 %v97, %v101
    %104 = vrot.lane.b32.xlu0 %v16, 2
    %v105 = vpop.permute.xlu0 %104
    %106 = vrot.lane.b32.xlu0 %v17, 2
    %v107 = vpop.permute.xlu0 %106
    %v110 = vsub.f32 %v16, %v105
    %v111 = vsub.f32 %v17, %v107
    %114 = vrot.lane.b32.xlu0 %v110, 127
    %v115 = vpop.permute.xlu0 %114
    %116 = vrot.lane.b32.xlu0 %v111, 127
    %v117 = vpop.permute.xlu0 %116
    %v120 = vmul.f32 %v110, %v115
    %v121 = vmul.f32 %v111, %v117
    %v124 = vrot.slane %v18, 6
    %v125 = vrot.slane %v19, 6
    %v128 = vsub.f32 %v18, %v124
    %v129 = vsub.f32 %v19, %v125
    %v132 = vrot.slane %v128, 1
    %v133 = vrot.slane %v129, 1
    %v136 = vmul.f32 %v128, %v132
    %v137 = vmul.f32 %v129, %v133
    %v138 = vlaneseq
    %v139 = vshrl.u32 %v138, 7
    %v140 = vsub.s32 2, %v139
    %v141 = vrot.slane %v136, %v140
    %v142 = vlaneseq
    %v143 = vshrl.u32 %v142, 7
    %v144 = vsub.s32 2, %v143
    %v145 = vrot.slane %v137, %v144
    %147 = vset.pattern.permute.xlu0 2
    %148 = vperm.xlu0 %147, %v120
    %v149 = vpop.permute.xlu0 %148
    %152 = vset.pattern.permute.xlu0 2
    %153 = vperm.xlu0 %152, %v121
    %v154 = vpop.permute.xlu0 %153
    %v156 = vadd.f32 %v141, %v149
    %v157 = vadd.f32 %v145, %v154
    %v158 = vsub.f32 %v156, %v102
    %v159 = vsub.f32 %v157, %v103
    %v160 = vrcp.pop %v158
    %v161 = vmul.f32 %v102, %v160
    %v162 = vrcp.pop %v159
    %v163 = vmul.f32 %v103, %v162
    %164 = vst [vmem:[#allocation2] sm:$0xff] %v161
    %165 = vst [vmem:[#allocation2 + $0x8] sm:$0xff] %v163
    %v166 = vrot.slane %v161, 4
    %v167 = vmax.f32 %v161, %v166
    %v168 = vrot.slane %v167, 2
    %v169 = vmax.f32 %v167, %v168
    %v170 = vrot.slane %v169, 1
    %v171 = vmax.f32 %v169, %v170
    %v172 = vrot.slane %v163, 4
    %v173 = vmax.f32 %v163, %v172
    %v174 = vrot.slane %v173, 2
    %v175 = vmax.f32 %v173, %v174
    %v176 = vrot.slane %v175, 1
    %v177 = vmax.f32 %v175, %v176
    %v178 = vlaneseq
    %v179 = vshrl.u32 %v178, 7
    %v180 = vcvt.s32.f32 %v179
    %vm181 = vcmp.eq.f32.partialorder %v161, %v171
    %vm182 = vcmp.eq.f32.partialorder %v163, %v177
    %v183 = vsel %vm181, %v180, 8.0
    %v184 = vsel %vm182, %v180, 8.0
    %v185 = vrot.slane %v183, 4
    %v186 = vmin.f32 %v183, %v185
    %v187 = vrot.slane %v186, 2
    %v188 = vmin.f32 %v186, %v187
    %v189 = vrot.slane %v188, 1
    %v190 = vmin.f32 %v188, %v189
    %v191 = vrot.slane %v184, 4
    %v192 = vmin.f32 %v184, %v191
    %v193 = vrot.slane %v192, 2
    %v194 = vmin.f32 %v192, %v193
    %v195 = vrot.slane %v194, 1
    %v196 = vmin.f32 %v194, %v195
    %vm197 = vcmp.lt.f32.partialorder %v171, 0.5
    %vm198 = vcmp.lt.f32.partialorder %v177, 0.5
    %v199 = vsel %vm197, -1.0, %v190
    %v200 = vsel %vm198, -1.0, %v196
    %v201 = vcvt.f32.s32.to.zero.pseudo %v199
    %v202 = vcvt.f32.s32.to.zero.pseudo %v200
    %203 = vst [vmem:[#allocation4] sm:$0x1] %v201
    %204 = vst [vmem:[#allocation4 + $0x2] sm:$0x1] %v202
    %v205 = vsel %vm197, 0, 1
    %v206 = vsel %vm198, 0, 1
    %207 = vst [vmem:[#allocation4 + $0x1] sm:$0x1] %v205
    %208 = vst [vmem:[#allocation4 + $0x3] sm:$0x1] %v206
    %v209 = vmax.f32 %v199, 0.0
    %v210 = vmax.f32 %v200, 0.0
    %vm211 = vcmp.eq.f32.partialorder %v180, %v209
    %vm212 = vcmp.eq.f32.partialorder %v180, %v210
    %v213 = vsel %vm211, 1, 0
    %v214 = vsel %vm212, 1, 0
    %v215 = vcvt.s32.f32 %v213
    %v216 = vcvt.s32.f32 %v214
    %v217 = vmul.f32 %v215, %v31
    %v218 = vmul.f32 %v216, %v36
    %v219 = vrot.slane %v217, 4
    %v220 = vadd.f32 %v217, %v219
    %v221 = vrot.slane %v220, 2
    %v222 = vadd.f32 %v220, %v221
    %v223 = vrot.slane %v222, 1
    %v224 = vadd.f32 %v222, %v223
    %v225 = vrot.slane %v218, 4
    %v226 = vadd.f32 %v218, %v225
    %v227 = vrot.slane %v226, 2
    %v228 = vadd.f32 %v226, %v227
    %v229 = vrot.slane %v228, 1
    %v230 = vadd.f32 %v228, %v229
    %v231 = vmul.f32 %v215, %v50
    %v232 = vmul.f32 %v216, %v54
    %v233 = vrot.slane %v231, 4
    %v234 = vadd.f32 %v231, %v233
    %v235 = vrot.slane %v234, 2
    %v236 = vadd.f32 %v234, %v235
    %v237 = vrot.slane %v236, 1
    %v238 = vadd.f32 %v236, %v237
    %v239 = vrot.slane %v232, 4
    %v240 = vadd.f32 %v232, %v239
    %v241 = vrot.slane %v240, 2
    %v242 = vadd.f32 %v240, %v241
    %v243 = vrot.slane %v242, 1
    %v244 = vadd.f32 %v242, %v243
    %v245 = vmul.f32 %v215, %v68
    %v246 = vmul.f32 %v216, %v72
    %v247 = vrot.slane %v245, 4
    %v248 = vadd.f32 %v245, %v247
    %v249 = vrot.slane %v248, 2
    %v250 = vadd.f32 %v248, %v249
    %v251 = vrot.slane %v250, 1
    %v252 = vadd.f32 %v250, %v251
    %v253 = vrot.slane %v246, 4
    %v254 = vadd.f32 %v246, %v253
    %v255 = vrot.slane %v254, 2
    %v256 = vadd.f32 %v254, %v255
    %v257 = vrot.slane %v256, 1
    %v258 = vadd.f32 %v256, %v257
    %v259 = vmul.f32 %v215, %v86
    %v260 = vmul.f32 %v216, %v90
    %v261 = vrot.slane %v259, 4
    %v262 = vadd.f32 %v259, %v261
    %v263 = vrot.slane %v262, 2
    %v264 = vadd.f32 %v262, %v263
    %v265 = vrot.slane %v264, 1
    %v266 = vadd.f32 %v264, %v265
    %v267 = vrot.slane %v260, 4
    %v268 = vadd.f32 %v260, %v267
    %v269 = vrot.slane %v268, 2
    %v270 = vadd.f32 %v268, %v269
    %v271 = vrot.slane %v270, 1
    %v272 = vadd.f32 %v270, %v271
    %v273 = vmul.f32 %v128, 0.5
    %v274 = vmul.f32 %v129, 0.5
    %v277 = vrot.slane %v273, 2
    %v278 = vrot.slane %v274, 2
    %v281 = vadd.f32 %v18, %v277
    %v282 = vadd.f32 %v19, %v278
    %v283 = vsub.f32 %v252, %v224
    %v284 = vsub.f32 %v258, %v230
    %v285 = vsub.f32 %v266, %v238
    %v286 = vsub.f32 %v272, %v244
    %v287 = vmul.f32 %v283, 0.5
    %v288 = vmul.f32 %v284, 0.5
    %v289 = vadd.f32 %v224, %v287
    %v290 = vadd.f32 %v230, %v288
    %v291 = vmul.f32 %v285, 0.5
    %v292 = vmul.f32 %v286, 0.5
    %v293 = vadd.f32 %v238, %v291
    %v294 = vadd.f32 %v244, %v292
    %v295 = vsub.f32 %v289, %v281
    %v296 = vsub.f32 %v290, %v282
    %v297 = vmul.f32 %v295, 10.0
    %v298 = vmul.f32 %v296, 10.0
    %v299 = vrot.slane %v128, 2
    %v300 = vrot.slane %v129, 2
    %v303 = vrcp.pop %v299
    %v304 = vmul.f32 %v297, %v303
    %v305 = vrcp.pop %v300
    %v306 = vmul.f32 %v298, %v305
    %307 = vst [vmem:[#allocation6] sm:$0x1] %v304
    %308 = vst [vmem:[#allocation6 + $0x4] sm:$0x1] %v306
    %v309 = vsub.f32 %v293, %v281
    %v310 = vsub.f32 %v294, %v282
    %v311 = vmul.f32 %v309, 10.0
    %v312 = vmul.f32 %v310, 10.0
    %v313 = vmul.f32 %v311, %v303
    %v314 = vmul.f32 %v312, %v305
    %315 = vst [vmem:[#allocation6] sm:$0x2] %v313
    %316 = vst [vmem:[#allocation6 + $0x4] sm:$0x2] %v314
    %v317 = vrcp.pop %v128
    %v318 = vmul.f32 %v283, %v317
    %v319 = vrcp.pop %v129
    %v320 = vmul.f32 %v284, %v319
    %v321 = vlog2.pop %v318
    %v322 = vmul.f32 %v321, 0.6931472
    %v323 = vlog2.pop %v320
    %v324 = vmul.f32 %v323, 0.6931472
    %v325 = vmul.f32 %v322, 5.0
    %v326 = vmul.f32 %v324, 5.0
    %327 = vst [vmem:[#allocation6] sm:$0x4] %v325
    %328 = vst [vmem:[#allocation6 + $0x4] sm:$0x4] %v326
    %v329 = vmul.f32 %v285, %v317
    %v330 = vmul.f32 %v286, %v319
    %v331 = vlog2.pop %v329
    %v332 = vmul.f32 %v331, 0.6931472
    %v333 = vlog2.pop %v330
    %v334 = vmul.f32 %v333, 0.6931472
    %v335 = vmul.f32 %v332, 5.0
    %v336 = vmul.f32 %v334, 5.0
    %337 = vst [vmem:[#allocation6] sm:$0x8] %v335
    %338 = vst [vmem:[#allocation6 + $0x4] sm:$0x8] %v336
    // Predicated region
    $region10: #{tpu_custom_call.1} parent=1 // pred_check
      _
    $region11: #{tpu_custom_call.1} parent=1 // pred_check_branch
      %340 = sbr.rel (0) target = $region13
    $region12: #{tpu_custom_call.1} parent=1 // pred_region
      %s342 = ssub.s32 256, 256
      %343 = vsyncadd [#allocation3], %s342
      %s344 = sshll.u32 [#allocation2], 4
      %s345 = int_to_ptr.vmem [resolvable:$true] %s344
      %350 = dma.vmem_to_hbm [thread:$0]  %s345, 256, %s2, [#allocation3], 128, 128, 8
    $region13: #{tpu_custom_call.1} parent=1 // pred_fallthru
      _
    // Predicated region
    $region14: #{tpu_custom_call.1} parent=1 // pred_check
      _
    $region15: #{tpu_custom_call.1} parent=1 // pred_check_branch
      %352 = sbr.rel (0) target = $region17
    $region16: #{tpu_custom_call.1} parent=1 // pred_region
      %s354 = ssub.s32 64, 64
      %355 = vsyncadd [#allocation5], %s354
      %s356 = sshll.u32 [#allocation4], 4
      %s357 = int_to_ptr.vmem [resolvable:$true] %s356
      %362 = dma.vmem_to_hbm [thread:$0]  %s357, 64, %s3, [#allocation5], 32, 32, 2
    $region17: #{tpu_custom_call.1} parent=1 // pred_fallthru
      _
    // Predicated region
    $region18: #{tpu_custom_call.1} parent=1 // pred_check
      _
    $region19: #{tpu_custom_call.1} parent=1 // pred_check_branch
      %364 = sbr.rel (0) target = $region21
    $region20: #{tpu_custom_call.1} parent=1 // pred_region
      %s366 = ssub.s32 128, 128
      %367 = vsyncadd [#allocation5], %s366
      %s368 = sshll.u32 [#allocation6], 4
      %s369 = int_to_ptr.vmem [resolvable:$true] %s368
      %374 = dma.vmem_to_hbm [thread:$0]  %s369, 128, %s4, [#allocation5], 64, 64, 4
    $region21: #{tpu_custom_call.1} parent=1 // pred_fallthru
      _
    // Predicated region
    $region22: #{tpu_custom_call.1} parent=1 // pred_check
      _
    $region23: #{tpu_custom_call.1} parent=1 // pred_check_branch
      %376 = sbr.rel (0) target = $region25
    $region24: #{tpu_custom_call.1} parent=1 // pred_region
      %377 = dma.done [#allocation3], 256
    $region25: #{tpu_custom_call.1} parent=1 // pred_fallthru
      _
    // Predicated region
    $region26: #{tpu_custom_call.1} parent=1 // pred_check
      _
    $region27: #{tpu_custom_call.1} parent=1 // pred_check_branch
      %379 = sbr.rel (0) target = $region29
    $region28: #{tpu_custom_call.1} parent=1 // pred_region
      %380 = dma.done [#allocation5], 64
    $region29: #{tpu_custom_call.1} parent=1 // pred_fallthru
      _
    // Predicated region
    $region30: #{tpu_custom_call.1} parent=1 // pred_check
      _
    $region31: #{tpu_custom_call.1} parent=1 // pred_check_branch
      %382 = sbr.rel (0) target = $region33
    $region32: #{tpu_custom_call.1} parent=1 // pred_region
      %383 = dma.done [#allocation5], 128
    $region33: #{tpu_custom_call.1} parent=1 // pred_fallthru
      _
    %384 = vsyncpa [#allocation3], 1
    %385 = vsyncpa [#allocation5], 1

</llo_original>
